<compile_context>
chip_gen: v7x
topology: tpu7x:2x2x1
jax: 0.10.0
libtpu: 0.0.40
codegen_flags: <defaults>
</compile_context>

<pallas_src>
import math

import jax
import jax.numpy as jnp
from jax.experimental import pallas as pl
from jax.experimental.pallas import tpu as pltpu

# Module hyper-parameters (from AgentUpdate.__init__)
WIDTH = 16
HEIGHT = 16
P = WIDTH * HEIGHT                       # flattened trail-map length (row-major)
MOVE_SPEED = 0.1
SENSOR_OFFSET = 0.3 * 2 * 3.141592
SENSOR_LENGTH = MOVE_SPEED * 50.0
TWO_PI = 2.0 * 3.141592
COS_SO = math.cos(SENSOR_OFFSET)         # compile-time angle-addition constants
SIN_SO = math.sin(SENSOR_OFFSET)


def agent_update_kernel(x_ref, y_ref, theta_ref, cos_ref, sin_ref,
                        u_ref, tr_ref, frame_ref,
                        xo_ref, yo_ref, to_ref):
    x = x_ref[...]                # (1, T) f32, agents lane-dense
    y = y_ref[...]
    theta = theta_ref[...]
    c_x = cos_ref[...]            # cos(theta)  (center sensor direction)
    c_y = sin_ref[...]            # sin(theta)
    u = u_ref[...]                # uniform [0, 1) for the categorical sample
    theta_rand = tr_ref[...]      # uniform [0, 2*pi) for boundary theta reset
    frame_row = frame_ref[...]    # (1, P) f32 trail map

    # Left / right sensor directions via angle addition (saves 4 HBM inputs).
    l_x = c_x * COS_SO + c_y * SIN_SO     # cos(theta - so)
    l_y = c_y * COS_SO - c_x * SIN_SO     # sin(theta - so)
    r_x = c_x * COS_SO - c_y * SIN_SO     # cos(theta + so)
    r_y = c_y * COS_SO + c_x * SIN_SO     # sin(theta + so)

    # --- sensor positions clipped into the frame, then row-major flat index ---
    def clipped_flat(dx, dy):
        sx = jnp.clip(x + dx * SENSOR_LENGTH, 0.0, WIDTH - 1.0)
        sy = jnp.clip(y + dy * SENSOR_LENGTH, 0.0, HEIGHT - 1.0)
        return sx.astype(jnp.int32) * HEIGHT + sy.astype(jnp.int32)   # (1, T)

    flat_l = clipped_flat(l_x, l_y)
    flat_r = clipped_flat(r_x, r_y)
    flat_c = clipped_flat(c_x, c_y)

    # --- frame gather as a one-hot matmul on the MXU ---
    t = x.shape[1]
    pos = jax.lax.broadcasted_iota(jnp.int32, (P, t), 0)               # (P, T)

    def gather(flat):
        onehot = (pos == flat).astype(jnp.float32)                     # (P, T)
        return jnp.dot(frame_row, onehot,
                       preferred_element_type=jnp.float32)             # (1, T)

    det_l = gather(flat_l)
    det_r = gather(flat_r)
    det_c = gather(flat_c)

    # --- softmax over the 3 detections (categories [l, r, c]) ---
    m = jnp.maximum(det_l, jnp.maximum(det_r, det_c))
    e_l = jnp.exp(det_l - m)
    e_r = jnp.exp(det_r - m)
    e_c = jnp.exp(det_c - m)
    # plain divide (pl.reciprocal(approx=True) lacks a CPU-interpret fallback)
    inv = 1.0 / (e_l + e_r + e_c)
    p_l = e_l * inv
    p_r = e_r * inv

    # --- one-hot categorical sample via inverse CDF on the uniform draw ---
    take_l = u < p_l
    take_r = jnp.logical_and(jnp.logical_not(take_l), u < (p_l + p_r))
    s_l = take_l.astype(jnp.float32)
    s_r = take_r.astype(jnp.float32)
    s_c = 1.0 - s_l - s_r

    sampled_x = s_l * l_x + s_r * r_x + s_c * c_x
    sampled_y = s_l * l_y + s_r * r_y + s_c * c_y

    x_new = x + sampled_x * MOVE_SPEED
    y_new = y + sampled_y * MOVE_SPEED

    # --- boundary handling (mirrors the torch where/clip chain) ---
    x_hi = x_new >= WIDTH
    x_lo = x_new <= 0.0
    y_hi = y_new >= HEIGHT
    y_lo = y_new <= 0.0
    x_cl = jnp.clip(x_new, 0.0, WIDTH - 1.0)
    y_cl = jnp.clip(y_new, 0.0, HEIGHT - 1.0)

    xo_ref[...] = jnp.where(jnp.logical_or(x_hi, x_lo), x_cl, x_new)
    yo_ref[...] = jnp.where(jnp.logical_or(y_hi, y_lo), y_cl, y_new)

    cnt = (x_hi.astype(jnp.float32) + x_lo.astype(jnp.float32)
           + y_hi.astype(jnp.float32) + y_lo.astype(jnp.float32))
    to_ref[...] = cnt * theta_rand + jnp.abs(cnt - 1.0) * theta


def _round_up(a, b):
    return ((a + b - 1) // b) * b


def agent_update(x, y, theta, frame, key, tile_n=2048):
    """x, y, theta: (N,) f32 agent state; frame: (WIDTH, HEIGHT) f32 trail map."""
    n = x.shape[0]
    # TILE_N: multiple of 128; (P, TILE_N) one-hot intermediates stay well under
    # the scoped-VMEM limit on v5e / v6e / v7x (2 MiB per sensor at 2048).
    tile_n = min(tile_n, _round_up(n, 128))
    n_pad = _round_up(n, tile_n)
    grid = (n_pad // tile_n,)

    cos_t = jnp.cos(theta)
    sin_t = jnp.sin(theta)

    ku, kt = jax.random.split(key)
    u = jax.random.uniform(ku, (n_pad,), jnp.float32)
    theta_rand = jax.random.uniform(kt, (n_pad,), jnp.float32) * TWO_PI

    def row(a):
        a = a.astype(jnp.float32)
        return jnp.pad(a, (0, n_pad - a.shape[0])).reshape(1, n_pad)

    vec_inputs = [row(x), row(y), row(theta), row(cos_t), row(sin_t),
                  u.reshape(1, n_pad), theta_rand.reshape(1, n_pad)]
    frame_row = frame.reshape(1, P).astype(jnp.float32)

    agent_spec = pl.BlockSpec((1, tile_n), lambda i: (0, i))
    frame_spec = pl.BlockSpec((1, P), lambda i: (0, 0))      # resident across grid
    out_shape = tuple(jax.ShapeDtypeStruct((1, n_pad), jnp.float32)
                      for _ in range(3))

    xo, yo, to = pl.pallas_call(
        agent_update_kernel,
        out_shape=out_shape,
        grid=grid,
        in_specs=[agent_spec] * 7 + [frame_spec],
        out_specs=(agent_spec, agent_spec, agent_spec),
        compiler_params=pltpu.CompilerParams(
            dimension_semantics=("parallel",),
            vmem_limit_bytes=32 * 1024 * 1024),
    )(*vec_inputs, frame_row)

    return xo.reshape(n_pad)[:n], yo.reshape(n_pad)[:n], to.reshape(n_pad)[:n]


if __name__ == "__main__":
    key = jax.random.PRNGKey(0)
    k1, k2, k3, k4, k5 = jax.random.split(key, 5)
    N = 256
    x = jax.random.uniform(k1, (N,), jnp.float32, 0.0, WIDTH - 1)
    y = jax.random.uniform(k2, (N,), jnp.float32, 0.0, HEIGHT - 1)
    theta = jax.random.uniform(k3, (N,), jnp.float32, 0.0, TWO_PI)
    frame = jax.random.uniform(k4, (WIDTH, HEIGHT), jnp.float32)

    xo, yo, to = agent_update(x, y, theta, frame, k5)
    jax.block_until_ready((xo, yo, to))

    assert xo.shape == (N,) and yo.shape == (N,) and to.shape == (N,)
    assert bool(jnp.all(jnp.isfinite(xo)))
    assert bool(jnp.all(jnp.isfinite(yo)))
    assert bool(jnp.all(jnp.isfinite(to)))
    # Positions that triggered a boundary stay inside [0, W-1]/[0, H-1].
    assert bool(jnp.all(xo <= WIDTH)) and bool(jnp.all(yo <= HEIGHT))
    print("KERNEL_OK")
</pallas_src>

<mosaic_0001>
module attributes {stable_mosaic.version = 11 : i64} {
  func.func @agent_update_kernel(%arg0: i32, %arg1: memref<1x256xf32, #tpu.memory_space<vmem>>, %arg2: memref<1x256xf32, #tpu.memory_space<vmem>>, %arg3: memref<1x256xf32, #tpu.memory_space<vmem>>, %arg4: memref<1x256xf32, #tpu.memory_space<vmem>>, %arg5: memref<1x256xf32, #tpu.memory_space<vmem>>, %arg6: memref<1x256xf32, #tpu.memory_space<vmem>>, %arg7: memref<1x256xf32, #tpu.memory_space<vmem>>, %arg8: memref<1x256xf32, #tpu.memory_space<vmem>>, %arg9: memref<1x256xf32, #tpu.memory_space<vmem>>, %arg10: memref<1x256xf32, #tpu.memory_space<vmem>>, %arg11: memref<1x256xf32, #tpu.memory_space<vmem>>) attributes {dimension_semantics = [#tpu.dimension_semantics<parallel>], iteration_bounds = array<i64: 1>, scalar_prefetch = 0 : i64, scratch_operands = 0 : i64, tpu.core_type = #tpu.core_type<tc>, window_params = [{transform_indices = @transform_0, window_bounds = array<i64: 1, 256>}, {transform_indices = @transform_1, window_bounds = array<i64: 1, 256>}, {transform_indices = @transform_2, window_bounds = array<i64: 1, 256>}, {transform_indices = @transform_3, window_bounds = array<i64: 1, 256>}, {transform_indices = @transform_4, window_bounds = array<i64: 1, 256>}, {transform_indices = @transform_5, window_bounds = array<i64: 1, 256>}, {transform_indices = @transform_6, window_bounds = array<i64: 1, 256>}, {pipeline_mode = #tpu.pipeline_mode<synchronous>, transform_indices = @transform_7, window_bounds = array<i64: 1, 256>}, {transform_indices = @transform_8, window_bounds = array<i64: 1, 256>}, {transform_indices = @transform_9, window_bounds = array<i64: 1, 256>}, {transform_indices = @transform_10, window_bounds = array<i64: 1, 256>}]} {
    %c0 = arith.constant 0 : index
    %c0_0 = arith.constant 0 : index
    %0 = vector.load %arg1[%c0, %c0_0] : memref<1x256xf32, #tpu.memory_space<vmem>>, vector<1x256xf32>
    %c0_1 = arith.constant 0 : index
    %c0_2 = arith.constant 0 : index
    %1 = vector.load %arg2[%c0_1, %c0_2] : memref<1x256xf32, #tpu.memory_space<vmem>>, vector<1x256xf32>
    %c0_3 = arith.constant 0 : index
    %c0_4 = arith.constant 0 : index
    %2 = vector.load %arg3[%c0_3, %c0_4] : memref<1x256xf32, #tpu.memory_space<vmem>>, vector<1x256xf32>
    %c0_5 = arith.constant 0 : index
    %c0_6 = arith.constant 0 : index
    %3 = vector.load %arg4[%c0_5, %c0_6] : memref<1x256xf32, #tpu.memory_space<vmem>>, vector<1x256xf32>
    %c0_7 = arith.constant 0 : index
    %c0_8 = arith.constant 0 : index
    %4 = vector.load %arg5[%c0_7, %c0_8] : memref<1x256xf32, #tpu.memory_space<vmem>>, vector<1x256xf32>
    %c0_9 = arith.constant 0 : index
    %c0_10 = arith.constant 0 : index
    %5 = vector.load %arg6[%c0_9, %c0_10] : memref<1x256xf32, #tpu.memory_space<vmem>>, vector<1x256xf32>
    %c0_11 = arith.constant 0 : index
    %c0_12 = arith.constant 0 : index
    %6 = vector.load %arg7[%c0_11, %c0_12] : memref<1x256xf32, #tpu.memory_space<vmem>>, vector<1x256xf32>
    %c0_13 = arith.constant 0 : index
    %c0_14 = arith.constant 0 : index
    %7 = vector.load %arg8[%c0_13, %c0_14] : memref<1x256xf32, #tpu.memory_space<vmem>>, vector<1x256xf32>
    %cst = arith.constant -0.309016615 : f32
    %8 = vector.broadcast %cst : f32 to vector<1x256xf32>
    %9 = arith.mulf %3, %8 : vector<1x256xf32>
    %cst_15 = arith.constant 0.951056659 : f32
    %10 = vector.broadcast %cst_15 : f32 to vector<1x256xf32>
    %11 = arith.mulf %4, %10 : vector<1x256xf32>
    %12 = arith.addf %9, %11 : vector<1x256xf32>
    %cst_16 = arith.constant -0.309016615 : f32
    %13 = vector.broadcast %cst_16 : f32 to vector<1x256xf32>
    %14 = arith.mulf %4, %13 : vector<1x256xf32>
    %cst_17 = arith.constant 0.951056659 : f32
    %15 = vector.broadcast %cst_17 : f32 to vector<1x256xf32>
    %16 = arith.mulf %3, %15 : vector<1x256xf32>
    %17 = arith.subf %14, %16 : vector<1x256xf32>
    %cst_18 = arith.constant -0.309016615 : f32
    %18 = vector.broadcast %cst_18 : f32 to vector<1x256xf32>
    %19 = arith.mulf %3, %18 : vector<1x256xf32>
    %cst_19 = arith.constant 0.951056659 : f32
    %20 = vector.broadcast %cst_19 : f32 to vector<1x256xf32>
    %21 = arith.mulf %4, %20 : vector<1x256xf32>
    %22 = arith.subf %19, %21 : vector<1x256xf32>
    %cst_20 = arith.constant -0.309016615 : f32
    %23 = vector.broadcast %cst_20 : f32 to vector<1x256xf32>
    %24 = arith.mulf %4, %23 : vector<1x256xf32>
    %cst_21 = arith.constant 0.951056659 : f32
    %25 = vector.broadcast %cst_21 : f32 to vector<1x256xf32>
    %26 = arith.mulf %3, %25 : vector<1x256xf32>
    %27 = arith.addf %24, %26 : vector<1x256xf32>
    %cst_22 = arith.constant 5.000000e+00 : f32
    %28 = vector.broadcast %cst_22 : f32 to vector<1x256xf32>
    %29 = arith.mulf %12, %28 : vector<1x256xf32>
    %30 = arith.addf %0, %29 : vector<1x256xf32>
    %cst_23 = arith.constant 0.000000e+00 : f32
    %cst_24 = arith.constant 1.500000e+01 : f32
    %31 = vector.broadcast %cst_23 : f32 to vector<1x256xf32>
    %32 = arith.maximumf %31, %30 : vector<1x256xf32>
    %33 = vector.broadcast %cst_24 : f32 to vector<1x256xf32>
    %34 = arith.minimumf %33, %32 : vector<1x256xf32>
    %cst_25 = arith.constant 5.000000e+00 : f32
    %35 = vector.broadcast %cst_25 : f32 to vector<1x256xf32>
    %36 = arith.mulf %17, %35 : vector<1x256xf32>
    %37 = arith.addf %1, %36 : vector<1x256xf32>
    %cst_26 = arith.constant 0.000000e+00 : f32
    %cst_27 = arith.constant 1.500000e+01 : f32
    %38 = vector.broadcast %cst_26 : f32 to vector<1x256xf32>
    %39 = arith.maximumf %38, %37 : vector<1x256xf32>
    %40 = vector.broadcast %cst_27 : f32 to vector<1x256xf32>
    %41 = arith.minimumf %40, %39 : vector<1x256xf32>
    %42 = arith.fptosi %34 : vector<1x256xf32> to vector<1x256xi32>
    %c16_i32 = arith.constant 16 : i32
    %43 = vector.broadcast %c16_i32 : i32 to vector<1x256xi32>
    %44 = arith.muli %42, %43 : vector<1x256xi32>
    %45 = arith.fptosi %41 : vector<1x256xf32> to vector<1x256xi32>
    %46 = arith.addi %44, %45 : vector<1x256xi32>
    %cst_28 = arith.constant 5.000000e+00 : f32
    %47 = vector.broadcast %cst_28 : f32 to vector<1x256xf32>
    %48 = arith.mulf %22, %47 : vector<1x256xf32>
    %49 = arith.addf %0, %48 : vector<1x256xf32>
    %cst_29 = arith.constant 0.000000e+00 : f32
    %cst_30 = arith.constant 1.500000e+01 : f32
    %50 = vector.broadcast %cst_29 : f32 to vector<1x256xf32>
    %51 = arith.maximumf %50, %49 : vector<1x256xf32>
    %52 = vector.broadcast %cst_30 : f32 to vector<1x256xf32>
    %53 = arith.minimumf %52, %51 : vector<1x256xf32>
    %cst_31 = arith.constant 5.000000e+00 : f32
    %54 = vector.broadcast %cst_31 : f32 to vector<1x256xf32>
    %55 = arith.mulf %27, %54 : vector<1x256xf32>
    %56 = arith.addf %1, %55 : vector<1x256xf32>
    %cst_32 = arith.constant 0.000000e+00 : f32
    %cst_33 = arith.constant 1.500000e+01 : f32
    %57 = vector.broadcast %cst_32 : f32 to vector<1x256xf32>
    %58 = arith.maximumf %57, %56 : vector<1x256xf32>
    %59 = vector.broadcast %cst_33 : f32 to vector<1x256xf32>
    %60 = arith.minimumf %59, %58 : vector<1x256xf32>
    %61 = arith.fptosi %53 : vector<1x256xf32> to vector<1x256xi32>
    %c16_i32_34 = arith.constant 16 : i32
    %62 = vector.broadcast %c16_i32_34 : i32 to vector<1x256xi32>
    %63 = arith.muli %61, %62 : vector<1x256xi32>
    %64 = arith.fptosi %60 : vector<1x256xf32> to vector<1x256xi32>
    %65 = arith.addi %63, %64 : vector<1x256xi32>
    %cst_35 = arith.constant 5.000000e+00 : f32
    %66 = vector.broadcast %cst_35 : f32 to vector<1x256xf32>
    %67 = arith.mulf %3, %66 : vector<1x256xf32>
    %68 = arith.addf %0, %67 : vector<1x256xf32>
    %cst_36 = arith.constant 0.000000e+00 : f32
    %cst_37 = arith.constant 1.500000e+01 : f32
    %69 = vector.broadcast %cst_36 : f32 to vector<1x256xf32>
    %70 = arith.maximumf %69, %68 : vector<1x256xf32>
    %71 = vector.broadcast %cst_37 : f32 to vector<1x256xf32>
    %72 = arith.minimumf %71, %70 : vector<1x256xf32>
    %cst_38 = arith.constant 5.000000e+00 : f32
    %73 = vector.broadcast %cst_38 : f32 to vector<1x256xf32>
    %74 = arith.mulf %4, %73 : vector<1x256xf32>
    %75 = arith.addf %1, %74 : vector<1x256xf32>
    %cst_39 = arith.constant 0.000000e+00 : f32
    %cst_40 = arith.constant 1.500000e+01 : f32
    %76 = vector.broadcast %cst_39 : f32 to vector<1x256xf32>
    %77 = arith.maximumf %76, %75 : vector<1x256xf32>
    %78 = vector.broadcast %cst_40 : f32 to vector<1x256xf32>
    %79 = arith.minimumf %78, %77 : vector<1x256xf32>
    %80 = arith.fptosi %72 : vector<1x256xf32> to vector<1x256xi32>
    %c16_i32_41 = arith.constant 16 : i32
    %81 = vector.broadcast %c16_i32_41 : i32 to vector<1x256xi32>
    %82 = arith.muli %80, %81 : vector<1x256xi32>
    %83 = arith.fptosi %79 : vector<1x256xf32> to vector<1x256xi32>
    %84 = arith.addi %82, %83 : vector<1x256xi32>
    %85 = tpu.iota {dimensions = array<i32: 0>} : vector<256x256xi32>
    %86 = vector.broadcast %46 : vector<1x256xi32> to vector<256x256xi32>
    %87 = arith.cmpi eq, %85, %86 : vector<256x256xi32>
    %88 = arith.extui %87 : vector<256x256xi1> to vector<256x256xi32>
    %89 = arith.sitofp %88 : vector<256x256xi32> to vector<256x256xf32>
    %cst_42 = arith.constant dense<0.000000e+00> : vector<1x256xf32>
    %90 = tpu.matmul %7, %89, %cst_42 {dimension_numbers = #tpu.dot_dimension_numbers<[1], [0], [0], [1], [0, 0, 1, 1], [], []>} : vector<1x256xf32>, vector<256x256xf32>, vector<1x256xf32> -> vector<1x256xf32>
    %91 = vector.broadcast %65 : vector<1x256xi32> to vector<256x256xi32>
    %92 = arith.cmpi eq, %85, %91 : vector<256x256xi32>
    %93 = arith.extui %92 : vector<256x256xi1> to vector<256x256xi32>
    %94 = arith.sitofp %93 : vector<256x256xi32> to vector<256x256xf32>
    %cst_43 = arith.constant dense<0.000000e+00> : vector<1x256xf32>
    %95 = tpu.matmul %7, %94, %cst_43 {dimension_numbers = #tpu.dot_dimension_numbers<[1], [0], [0], [1], [0, 0, 1, 1], [], []>} : vector<1x256xf32>, vector<256x256xf32>, vector<1x256xf32> -> vector<1x256xf32>
    %96 = vector.broadcast %84 : vector<1x256xi32> to vector<256x256xi32>
    %97 = arith.cmpi eq, %85, %96 : vector<256x256xi32>
    %98 = arith.extui %97 : vector<256x256xi1> to vector<256x256xi32>
    %99 = arith.sitofp %98 : vector<256x256xi32> to vector<256x256xf32>
    %cst_44 = arith.constant dense<0.000000e+00> : vector<1x256xf32>
    %100 = tpu.matmul %7, %99, %cst_44 {dimension_numbers = #tpu.dot_dimension_numbers<[1], [0], [0], [1], [0, 0, 1, 1], [], []>} : vector<1x256xf32>, vector<256x256xf32>, vector<1x256xf32> -> vector<1x256xf32>
    %101 = arith.maximumf %95, %100 : vector<1x256xf32>
    %102 = arith.maximumf %90, %101 : vector<1x256xf32>
    %103 = arith.subf %90, %102 : vector<1x256xf32>
    %104 = math.exp %103 : vector<1x256xf32>
    %105 = arith.subf %95, %102 : vector<1x256xf32>
    %106 = math.exp %105 : vector<1x256xf32>
    %107 = arith.subf %100, %102 : vector<1x256xf32>
    %108 = math.exp %107 : vector<1x256xf32>
    %109 = arith.addf %104, %106 : vector<1x256xf32>
    %110 = arith.addf %109, %108 : vector<1x256xf32>
    %cst_45 = arith.constant 1.000000e+00 : f32
    %111 = vector.broadcast %cst_45 : f32 to vector<1x256xf32>
    %112 = arith.divf %111, %110 : vector<1x256xf32>
    %113 = arith.mulf %104, %112 : vector<1x256xf32>
    %114 = arith.mulf %106, %112 : vector<1x256xf32>
    %115 = arith.cmpf olt, %5, %113 : vector<1x256xf32>
    %cst_46 = arith.constant dense<true> : vector<1x256xi1>
    %116 = arith.xori %115, %cst_46 : vector<1x256xi1>
    %117 = arith.addf %113, %114 : vector<1x256xf32>
    %118 = arith.cmpf olt, %5, %117 : vector<1x256xf32>
    %119 = arith.andi %116, %118 : vector<1x256xi1>
    %120 = arith.extui %115 : vector<1x256xi1> to vector<1x256xi32>
    %121 = arith.sitofp %120 : vector<1x256xi32> to vector<1x256xf32>
    %122 = arith.extui %119 : vector<1x256xi1> to vector<1x256xi32>
    %123 = arith.sitofp %122 : vector<1x256xi32> to vector<1x256xf32>
    %cst_47 = arith.constant 1.000000e+00 : f32
    %124 = vector.broadcast %cst_47 : f32 to vector<1x256xf32>
    %125 = arith.subf %124, %121 : vector<1x256xf32>
    %126 = arith.subf %125, %123 : vector<1x256xf32>
    %127 = arith.mulf %121, %12 : vector<1x256xf32>
    %128 = arith.mulf %123, %22 : vector<1x256xf32>
    %129 = arith.addf %127, %128 : vector<1x256xf32>
    %130 = arith.mulf %126, %3 : vector<1x256xf32>
    %131 = arith.addf %129, %130 : vector<1x256xf32>
    %132 = arith.mulf %121, %17 : vector<1x256xf32>
    %133 = arith.mulf %123, %27 : vector<1x256xf32>
    %134 = arith.addf %132, %133 : vector<1x256xf32>
    %135 = arith.mulf %126, %4 : vector<1x256xf32>
    %136 = arith.addf %134, %135 : vector<1x256xf32>
    %cst_48 = arith.constant 1.000000e-01 : f32
    %137 = vector.broadcast %cst_48 : f32 to vector<1x256xf32>
    %138 = arith.mulf %131, %137 : vector<1x256xf32>
    %139 = arith.addf %0, %138 : vector<1x256xf32>
    %cst_49 = arith.constant 1.000000e-01 : f32
    %140 = vector.broadcast %cst_49 : f32 to vector<1x256xf32>
    %141 = arith.mulf %136, %140 : vector<1x256xf32>
    %142 = arith.addf %1, %141 : vector<1x256xf32>
    %cst_50 = arith.constant 1.600000e+01 : f32
    %143 = vector.broadcast %cst_50 : f32 to vector<1x256xf32>
    %144 = arith.cmpf oge, %139, %143 : vector<1x256xf32>
    %cst_51 = arith.constant 0.000000e+00 : f32
    %145 = vector.broadcast %cst_51 : f32 to vector<1x256xf32>
    %146 = arith.cmpf ole, %139, %145 : vector<1x256xf32>
    %cst_52 = arith.constant 1.600000e+01 : f32
    %147 = vector.broadcast %cst_52 : f32 to vector<1x256xf32>
    %148 = arith.cmpf oge, %142, %147 : vector<1x256xf32>
    %cst_53 = arith.constant 0.000000e+00 : f32
    %149 = vector.broadcast %cst_53 : f32 to vector<1x256xf32>
    %150 = arith.cmpf ole, %142, %149 : vector<1x256xf32>
    %cst_54 = arith.constant 0.000000e+00 : f32
    %cst_55 = arith.constant 1.500000e+01 : f32
    %151 = vector.broadcast %cst_54 : f32 to vector<1x256xf32>
    %152 = arith.maximumf %151, %139 : vector<1x256xf32>
    %153 = vector.broadcast %cst_55 : f32 to vector<1x256xf32>
    %154 = arith.minimumf %153, %152 : vector<1x256xf32>
    %cst_56 = arith.constant 0.000000e+00 : f32
    %cst_57 = arith.constant 1.500000e+01 : f32
    %155 = vector.broadcast %cst_56 : f32 to vector<1x256xf32>
    %156 = arith.maximumf %155, %142 : vector<1x256xf32>
    %157 = vector.broadcast %cst_57 : f32 to vector<1x256xf32>
    %158 = arith.minimumf %157, %156 : vector<1x256xf32>
    %159 = arith.ori %144, %146 : vector<1x256xi1>
    %160 = arith.select %159, %154, %139 : vector<1x256xi1>, vector<1x256xf32>
    %c0_58 = arith.constant 0 : index
    %c0_59 = arith.constant 0 : index
    %161 = vector.load %arg9[%c0_58, %c0_59] : memref<1x256xf32, #tpu.memory_space<vmem>>, vector<1x256xf32>
    tpu.vector_store %arg9[%c0_58, %c0_59], %160 {strides = array<i32>} : memref<1x256xf32, #tpu.memory_space<vmem>>, vector<1x256xf32>,
    %162 = arith.ori %148, %150 : vector<1x256xi1>
    %163 = arith.select %162, %158, %142 : vector<1x256xi1>, vector<1x256xf32>
    %c0_60 = arith.constant 0 : index
    %c0_61 = arith.constant 0 : index
    %164 = vector.load %arg10[%c0_60, %c0_61] : memref<1x256xf32, #tpu.memory_space<vmem>>, vector<1x256xf32>
    tpu.vector_store %arg10[%c0_60, %c0_61], %163 {strides = array<i32>} : memref<1x256xf32, #tpu.memory_space<vmem>>, vector<1x256xf32>,
    %165 = arith.extui %144 : vector<1x256xi1> to vector<1x256xi32>
    %166 = arith.sitofp %165 : vector<1x256xi32> to vector<1x256xf32>
    %167 = arith.extui %146 : vector<1x256xi1> to vector<1x256xi32>
    %168 = arith.sitofp %167 : vector<1x256xi32> to vector<1x256xf32>
    %169 = arith.addf %166, %168 : vector<1x256xf32>
    %170 = arith.extui %148 : vector<1x256xi1> to vector<1x256xi32>
    %171 = arith.sitofp %170 : vector<1x256xi32> to vector<1x256xf32>
    %172 = arith.addf %169, %171 : vector<1x256xf32>
    %173 = arith.extui %150 : vector<1x256xi1> to vector<1x256xi32>
    %174 = arith.sitofp %173 : vector<1x256xi32> to vector<1x256xf32>
    %175 = arith.addf %172, %174 : vector<1x256xf32>
    %176 = arith.mulf %175, %6 : vector<1x256xf32>
    %cst_62 = arith.constant 1.000000e+00 : f32
    %177 = vector.broadcast %cst_62 : f32 to vector<1x256xf32>
    %178 = arith.subf %175, %177 : vector<1x256xf32>
    %179 = math.absf %178 : vector<1x256xf32>
    %180 = arith.mulf %179, %2 : vector<1x256xf32>
    %181 = arith.addf %176, %180 : vector<1x256xf32>
    %c0_63 = arith.constant 0 : index
    %c0_64 = arith.constant 0 : index
    %182 = vector.load %arg11[%c0_63, %c0_64] : memref<1x256xf32, #tpu.memory_space<vmem>>, vector<1x256xf32>
    tpu.vector_store %arg11[%c0_63, %c0_64], %181 {strides = array<i32>} : memref<1x256xf32, #tpu.memory_space<vmem>>, vector<1x256xf32>,
    return
  }
  func.func @transform_0(%arg0: i32) -> (i32, i32) {
    %c0_i32 = arith.constant 0 : i32
    %c0_i32_0 = arith.constant 0 : i32
    return %c0_i32, %arg0 : i32, i32
  }
  func.func @transform_1(%arg0: i32) -> (i32, i32) {
    %c0_i32 = arith.constant 0 : i32
    %c0_i32_0 = arith.constant 0 : i32
    return %c0_i32, %arg0 : i32, i32
  }
  func.func @transform_2(%arg0: i32) -> (i32, i32) {
    %c0_i32 = arith.constant 0 : i32
    %c0_i32_0 = arith.constant 0 : i32
    return %c0_i32, %arg0 : i32, i32
  }
  func.func @transform_3(%arg0: i32) -> (i32, i32) {
    %c0_i32 = arith.constant 0 : i32
    %c0_i32_0 = arith.constant 0 : i32
    return %c0_i32, %arg0 : i32, i32
  }
  func.func @transform_4(%arg0: i32) -> (i32, i32) {
    %c0_i32 = arith.constant 0 : i32
    %c0_i32_0 = arith.constant 0 : i32
    return %c0_i32, %arg0 : i32, i32
  }
  func.func @transform_5(%arg0: i32) -> (i32, i32) {
    %c0_i32 = arith.constant 0 : i32
    %c0_i32_0 = arith.constant 0 : i32
    return %c0_i32, %arg0 : i32, i32
  }
  func.func @transform_6(%arg0: i32) -> (i32, i32) {
    %c0_i32 = arith.constant 0 : i32
    %c0_i32_0 = arith.constant 0 : i32
    return %c0_i32, %arg0 : i32, i32
  }
  func.func @transform_7(%arg0: i32) -> (i32, i32) {
    %c0_i32 = arith.constant 0 : i32
    %c0_i32_0 = arith.constant 0 : i32
    %c0_i32_1 = arith.constant 0 : i32
    return %c0_i32, %c0_i32_0 : i32, i32
  }
  func.func @transform_8(%arg0: i32) -> (i32, i32) {
    %c0_i32 = arith.constant 0 : i32
    %c0_i32_0 = arith.constant 0 : i32
    return %c0_i32, %arg0 : i32, i32
  }
  func.func @transform_9(%arg0: i32) -> (i32, i32) {
    %c0_i32 = arith.constant 0 : i32
    %c0_i32_0 = arith.constant 0 : i32
    return %c0_i32, %arg0 : i32, i32
  }
  func.func @transform_10(%arg0: i32) -> (i32, i32) {
    %c0_i32 = arith.constant 0 : i32
    %c0_i32_0 = arith.constant 0 : i32
    return %c0_i32, %arg0 : i32, i32
  }
}

</mosaic_0001>

<llo_original>
// kernel: tpu_custom_call.1
$region0: #{tpu_custom_call.1}
  #allocation0 [shape = 'u32[]', space=smem, size = 0x4, offset = 0x4, fixed_abs, tag = 'smem constant byte address 0x4 - core index']
  #allocation1 [shape = 'u32[144,128]{1,0:T(1,128)}', space=vmem, size = 0x12000, scoped, tag = 'internal scratch']
  %s0 = inlined_call_operand.hbm [shape: f32[1,256], index: 0, kind: input, shape index: {}]
  %s1 = inlined_call_operand.vmem [shape: f32[1,256], index: 1, kind: input, shape index: {}]
  %s2 = inlined_call_operand.vmem [shape: f32[1,256], index: 2, kind: input, shape index: {}]
  %s3 = inlined_call_operand.vmem [shape: f32[1,256], index: 3, kind: input, shape index: {}]
  %s4 = inlined_call_operand.vmem [shape: f32[1,256], index: 4, kind: input, shape index: {}]
  %s5 = inlined_call_operand.vmem [shape: f32[1,256], index: 5, kind: input, shape index: {}]
  %s6 = inlined_call_operand.vmem [shape: f32[1,256], index: 6, kind: input, shape index: {}]
  %s7 = inlined_call_operand.vmem [shape: f32[1,256], index: 7, kind: input, shape index: {}]
  %s8 = inlined_call_operand.hbm [shape: f32[1,256], index: 8, kind: output, shape index: {0}]
  %s9 = inlined_call_operand.hbm [shape: f32[1,256], index: 9, kind: output, shape index: {1}]
  %s10 = inlined_call_operand.hbm [shape: f32[1,256], index: 10, kind: output, shape index: {2}]
  %11 = xla_tuple %s8, %s9, %s10
  %s12 = sld [smem:[#allocation0]]
  $region62: #{tpu_custom_call.1} parent=0
    _
  %s14 = ssub.s32 1, %s12
  %s15 = scalar_select 0, %s14, %s12
  $region1: #{tpu_custom_call.1} parent=0
    #allocation2 [shape = 'u8[1024]{0}', space=vmem, size = 0x400, scoped, tag = 'input window, operand 0, single buffered']
    #allocation3 [shape = 's32[1]{0}', space=sflag, size = 0x4, scoped, tag = 'scoped memory for tpu_custom_call.1']
    #allocation4 [shape = 's32[1]{0}', space=sflag, size = 0x4, scoped, tag = 'scoped memory for tpu_custom_call.1']
    #allocation5 [shape = 'u8[1024]{0}', space=vmem, size = 0x400, scoped, tag = 'output window, operand 0, single buffered']
    #allocation6 [shape = 'u8[1024]{0}', space=vmem, size = 0x400, scoped, tag = 'output window, operand 1, single buffered']
    #allocation7 [shape = 's32[1]{0}', space=sflag, size = 0x4, scoped, tag = 'scoped memory for tpu_custom_call.1']
    #allocation8 [shape = 'u8[1024]{0}', space=vmem, size = 0x400, scoped, tag = 'output window, operand 2, single buffered']
    %16 = vsyncpa [#allocation3], 0
    %17 = vsyncpa [#allocation4], 0
    %18 = vsyncpa [#allocation7], 0
    // Predicated region
    $region2: #{tpu_custom_call.1} parent=1 // pred_check
      _
    $region3: #{tpu_custom_call.1} parent=1 // pred_check_branch
      %20 = sbr.rel (0) target = $region5
    $region4: #{tpu_custom_call.1} parent=1 // pred_region
      %s22 = ssub.s32 32, 32
      %23 = vsyncadd [#allocation3], %s22
      %s25 = sshll.u32 [#allocation2], 4
      %s26 = int_to_ptr.vmem [resolvable:$true] %s25
      %28 = dma.hbm_to_vmem [thread:$0]  %s0, 32, %s26, [#allocation3]
    $region5: #{tpu_custom_call.1} parent=1 // pred_fallthru
      _
    // Predicated region
    $region6: #{tpu_custom_call.1} parent=1 // pred_check
      _
    $region7: #{tpu_custom_call.1} parent=1 // pred_check_branch
      %30 = sbr.rel (0) target = $region9
    $region8: #{tpu_custom_call.1} parent=1 // pred_region
      _
    $region9: #{tpu_custom_call.1} parent=1 // pred_fallthru
      _
    // Predicated region
    $region10: #{tpu_custom_call.1} parent=1 // pred_check
      _
    $region11: #{tpu_custom_call.1} parent=1 // pred_check_branch
      %32 = sbr.rel (0) target = $region13
    $region12: #{tpu_custom_call.1} parent=1 // pred_region
      _
    $region13: #{tpu_custom_call.1} parent=1 // pred_fallthru
      _
    // Predicated region
    $region14: #{tpu_custom_call.1} parent=1 // pred_check
      _
    $region15: #{tpu_custom_call.1} parent=1 // pred_check_branch
      %34 = sbr.rel (0) target = $region17
    $region16: #{tpu_custom_call.1} parent=1 // pred_region
      _
    $region17: #{tpu_custom_call.1} parent=1 // pred_fallthru
      _
    // Predicated region
    $region18: #{tpu_custom_call.1} parent=1 // pred_check
      _
    $region19: #{tpu_custom_call.1} parent=1 // pred_check_branch
      %36 = sbr.rel (0) target = $region21
    $region20: #{tpu_custom_call.1} parent=1 // pred_region
      _
    $region21: #{tpu_custom_call.1} parent=1 // pred_fallthru
      _
    // Predicated region
    $region22: #{tpu_custom_call.1} parent=1 // pred_check
      _
    $region23: #{tpu_custom_call.1} parent=1 // pred_check_branch
      %38 = sbr.rel (0) target = $region25
    $region24: #{tpu_custom_call.1} parent=1 // pred_region
      _
    $region25: #{tpu_custom_call.1} parent=1 // pred_fallthru
      _
    // Predicated region
    $region26: #{tpu_custom_call.1} parent=1 // pred_check
      _
    $region27: #{tpu_custom_call.1} parent=1 // pred_check_branch
      %40 = sbr.rel (0) target = $region29
    $region28: #{tpu_custom_call.1} parent=1 // pred_region
      _
    $region29: #{tpu_custom_call.1} parent=1 // pred_fallthru
      _
    // Predicated region
    $region30: #{tpu_custom_call.1} parent=1 // pred_check
      _
    $region31: #{tpu_custom_call.1} parent=1 // pred_check_branch
      %42 = sbr.rel (0) target = $region33
    $region32: #{tpu_custom_call.1} parent=1 // pred_region
      _
    $region33: #{tpu_custom_call.1} parent=1 // pred_fallthru
      _
    // Predicated region
    $region34: #{tpu_custom_call.1} parent=1 // pred_check
      _
    $region35: #{tpu_custom_call.1} parent=1 // pred_check_branch
      %44 = sbr.rel (0) target = $region37
    $region36: #{tpu_custom_call.1} parent=1 // pred_region
      %45 = dma.done [#allocation3], 32
    $region37: #{tpu_custom_call.1} parent=1 // pred_fallthru
      _
    %v46 = vld [vmem:[#allocation2] sm:$0x3]
    %v47 = vld [vmem:[%s1] sm:$0x3]
    %v48 = vld [vmem:[%s2] sm:$0x3]
    %v49 = vld [vmem:[%s3] sm:$0x3]
    %v50 = vld [vmem:[%s4] sm:$0x3]
    %v51 = vld [vmem:[%s5] sm:$0x3]
    %v52 = vld [vmem:[%s6] sm:$0x3]
    %v53 = vld [vmem:[%s7] sm:$0x3]
    %v54 = vmul.f32 %v49, -0.30901662
    %v55 = vmul.f32 %v50, 0.95105666
    %v56 = vadd.f32 %v54, %v55
    %v57 = vmul.f32 %v50, -0.30901662
    %v58 = vmul.f32 %v49, 0.95105666
    %v59 = vsub.f32 %v57, %v58
    %v60 = vsub.f32 %v54, %v55
    %v61 = vadd.f32 %v57, %v58
    %v62 = vmul.f32 %v56, 5.0
    %v63 = vadd.f32 %v46, %v62
    %v64 = vmax.f32 %v63, 0.0
    %v65 = vmin.f32 %v64, 15.0
    %v66 = vmul.f32 %v59, 5.0
    %v67 = vadd.f32 %v47, %v66
    %v68 = vmax.f32 %v67, 0.0
    %v69 = vmin.f32 %v68, 15.0
    %v70 = vcvt.f32.s32.to.zero.pseudo %v65
    %v71 = vmul.u32 %v70, 16
    %v72 = vcvt.f32.s32.to.zero.pseudo %v69
    %v73 = vadd.s32 %v71, %v72
    %v74 = vmul.f32 %v60, 5.0
    %v75 = vadd.f32 %v46, %v74
    %v76 = vmax.f32 %v75, 0.0
    %v77 = vmin.f32 %v76, 15.0
    %v78 = vmul.f32 %v61, 5.0
    %v79 = vadd.f32 %v47, %v78
    %v80 = vmax.f32 %v79, 0.0
    %v81 = vmin.f32 %v80, 15.0
    %v82 = vcvt.f32.s32.to.zero.pseudo %v77
    %v83 = vmul.u32 %v82, 16
    %v84 = vcvt.f32.s32.to.zero.pseudo %v81
    %v85 = vadd.s32 %v83, %v84
    %v86 = vmul.f32 %v49, 5.0
    %v87 = vadd.f32 %v46, %v86
    %v88 = vmax.f32 %v87, 0.0
    %v89 = vmin.f32 %v88, 15.0
    %v90 = vmul.f32 %v50, 5.0
    %v91 = vadd.f32 %v47, %v90
    %v92 = vmax.f32 %v91, 0.0
    %v93 = vmin.f32 %v92, 15.0
    %v94 = vcvt.f32.s32.to.zero.pseudo %v89
    %v95 = vmul.u32 %v94, 16
    %v96 = vcvt.f32.s32.to.zero.pseudo %v93
    %v97 = vadd.s32 %v95, %v96
    %v98 = vlaneseq
    %v99 = vshrl.u32 %v98, 7
    %v100 = vadd.s32 %v99, 8
    %v101 = vadd.s32 %v99, 16
    %v102 = vadd.s32 %v99, 24
    %v103 = vadd.s32 %v99, 32
    %v104 = vadd.s32 %v99, 40
    %v105 = vadd.s32 %v99, 48
    %v106 = vadd.s32 %v99, 56
    %v107 = vadd.s32 %v99, 64
    %v108 = vadd.s32 %v99, 72
    %v109 = vadd.s32 %v99, 80
    %v110 = vadd.s32 %v99, 88
    %v111 = vadd.s32 %v99, 96
    %v112 = vadd.s32 %v99, 104
    %v113 = vadd.s32 %v99, 112
    %v114 = vadd.s32 %v99, 120
    %v115 = vadd.s32 %v99, 128
    %v116 = vadd.s32 %v99, 136
    %v117 = vadd.s32 %v99, 144
    %v118 = vadd.s32 %v99, 152
    %v119 = vadd.s32 %v99, 160
    %v120 = vadd.s32 %v99, 168
    %v121 = vadd.s32 %v99, 176
    %v122 = vadd.s32 %v99, 184
    %v123 = vadd.s32 %v99, 192
    %v124 = vadd.s32 %v99, 200
    %v125 = vadd.s32 %v99, 208
    %v126 = vadd.s32 %v99, 216
    %v127 = vadd.s32 %v99, 224
    %v128 = vadd.s32 %v99, 232
    %v129 = vadd.s32 %v99, 240
    %v130 = vadd.s32 %v99, 248
    %v131 = vlaneseq
    %v132 = vshrl.u32 %v131, 7
    %v133 = vsub.s32 0, %v132
    %v134 = vrot.slane %v73, %v133
    %v135 = vlaneseq
    %v136 = vshrl.u32 %v135, 7
    %v137 = vsub.s32 1, %v136
    %v138 = vrot.slane %v73, %v137
    %vm139 = vcmp.eq.s32.totalorder %v99, %v134
    %vm140 = vcmp.eq.s32.totalorder %v99, %v138
    %vm141 = vcmp.eq.s32.totalorder %v100, %v134
    %vm142 = vcmp.eq.s32.totalorder %v100, %v138
    %vm143 = vcmp.eq.s32.totalorder %v101, %v134
    %vm144 = vcmp.eq.s32.totalorder %v101, %v138
    %vm145 = vcmp.eq.s32.totalorder %v102, %v134
    %vm146 = vcmp.eq.s32.totalorder %v102, %v138
    %vm147 = vcmp.eq.s32.totalorder %v103, %v134
    %vm148 = vcmp.eq.s32.totalorder %v103, %v138
    %vm149 = vcmp.eq.s32.totalorder %v104, %v134
    %vm150 = vcmp.eq.s32.totalorder %v104, %v138
    %vm151 = vcmp.eq.s32.totalorder %v105, %v134
    %vm152 = vcmp.eq.s32.totalorder %v105, %v138
    %vm153 = vcmp.eq.s32.totalorder %v106, %v134
    %vm154 = vcmp.eq.s32.totalorder %v106, %v138
    %vm155 = vcmp.eq.s32.totalorder %v107, %v134
    %vm156 = vcmp.eq.s32.totalorder %v107, %v138
    %vm157 = vcmp.eq.s32.totalorder %v108, %v134
    %vm158 = vcmp.eq.s32.totalorder %v108, %v138
    %vm159 = vcmp.eq.s32.totalorder %v109, %v134
    %vm160 = vcmp.eq.s32.totalorder %v109, %v138
    %vm161 = vcmp.eq.s32.totalorder %v110, %v134
    %vm162 = vcmp.eq.s32.totalorder %v110, %v138
    %vm163 = vcmp.eq.s32.totalorder %v111, %v134
    %vm164 = vcmp.eq.s32.totalorder %v111, %v138
    %vm165 = vcmp.eq.s32.totalorder %v112, %v134
    %vm166 = vcmp.eq.s32.totalorder %v112, %v138
    %vm167 = vcmp.eq.s32.totalorder %v113, %v134
    %vm168 = vcmp.eq.s32.totalorder %v113, %v138
    %vm169 = vcmp.eq.s32.totalorder %v114, %v134
    %vm170 = vcmp.eq.s32.totalorder %v114, %v138
    %vm171 = vcmp.eq.s32.totalorder %v115, %v134
    %vm172 = vcmp.eq.s32.totalorder %v115, %v138
    %vm173 = vcmp.eq.s32.totalorder %v116, %v134
    %vm174 = vcmp.eq.s32.totalorder %v116, %v138
    %vm175 = vcmp.eq.s32.totalorder %v117, %v134
    %vm176 = vcmp.eq.s32.totalorder %v117, %v138
    %vm177 = vcmp.eq.s32.totalorder %v118, %v134
    %vm178 = vcmp.eq.s32.totalorder %v118, %v138
    %vm179 = vcmp.eq.s32.totalorder %v119, %v134
    %vm180 = vcmp.eq.s32.totalorder %v119, %v138
    %vm181 = vcmp.eq.s32.totalorder %v120, %v134
    %vm182 = vcmp.eq.s32.totalorder %v120, %v138
    %vm183 = vcmp.eq.s32.totalorder %v121, %v134
    %vm184 = vcmp.eq.s32.totalorder %v121, %v138
    %vm185 = vcmp.eq.s32.totalorder %v122, %v134
    %vm186 = vcmp.eq.s32.totalorder %v122, %v138
    %vm187 = vcmp.eq.s32.totalorder %v123, %v134
    %vm188 = vcmp.eq.s32.totalorder %v123, %v138
    %vm189 = vcmp.eq.s32.totalorder %v124, %v134
    %vm190 = vcmp.eq.s32.totalorder %v124, %v138
    %vm191 = vcmp.eq.s32.totalorder %v125, %v134
    %vm192 = vcmp.eq.s32.totalorder %v125, %v138
    %vm193 = vcmp.eq.s32.totalorder %v126, %v134
    %vm194 = vcmp.eq.s32.totalorder %v126, %v138
    %vm195 = vcmp.eq.s32.totalorder %v127, %v134
    %vm196 = vcmp.eq.s32.totalorder %v127, %v138
    %vm197 = vcmp.eq.s32.totalorder %v128, %v134
    %vm198 = vcmp.eq.s32.totalorder %v128, %v138
    %vm199 = vcmp.eq.s32.totalorder %v129, %v134
    %vm200 = vcmp.eq.s32.totalorder %v129, %v138
    %vm201 = vcmp.eq.s32.totalorder %v130, %v134
    %vm202 = vcmp.eq.s32.totalorder %v130, %v138
    %v203 = vsel %vm139, 1, 0
    %v204 = vsel %vm140, 1, 0
    %v205 = vsel %vm141, 1, 0
    %v206 = vsel %vm142, 1, 0
    %v207 = vsel %vm143, 1, 0
    %v208 = vsel %vm144, 1, 0
    %v209 = vsel %vm145, 1, 0
    %v210 = vsel %vm146, 1, 0
    %v211 = vsel %vm147, 1, 0
    %v212 = vsel %vm148, 1, 0
    %v213 = vsel %vm149, 1, 0
    %v214 = vsel %vm150, 1, 0
    %v215 = vsel %vm151, 1, 0
    %v216 = vsel %vm152, 1, 0
    %v217 = vsel %vm153, 1, 0
    %v218 = vsel %vm154, 1, 0
    %v219 = vsel %vm155, 1, 0
    %v220 = vsel %vm156, 1, 0
    %v221 = vsel %vm157, 1, 0
    %v222 = vsel %vm158, 1, 0
    %v223 = vsel %vm159, 1, 0
    %v224 = vsel %vm160, 1, 0
    %v225 = vsel %vm161, 1, 0
    %v226 = vsel %vm162, 1, 0
    %v227 = vsel %vm163, 1, 0
    %v228 = vsel %vm164, 1, 0
    %v229 = vsel %vm165, 1, 0
    %v230 = vsel %vm166, 1, 0
    %v231 = vsel %vm167, 1, 0
    %v232 = vsel %vm168, 1, 0
    %v233 = vsel %vm169, 1, 0
    %v234 = vsel %vm170, 1, 0
    %v235 = vsel %vm171, 1, 0
    %v236 = vsel %vm172, 1, 0
    %v237 = vsel %vm173, 1, 0
    %v238 = vsel %vm174, 1, 0
    %v239 = vsel %vm175, 1, 0
    %v240 = vsel %vm176, 1, 0
    %v241 = vsel %vm177, 1, 0
    %v242 = vsel %vm178, 1, 0
    %v243 = vsel %vm179, 1, 0
    %v244 = vsel %vm180, 1, 0
    %v245 = vsel %vm181, 1, 0
    %v246 = vsel %vm182, 1, 0
    %v247 = vsel %vm183, 1, 0
    %v248 = vsel %vm184, 1, 0
    %v249 = vsel %vm185, 1, 0
    %v250 = vsel %vm186, 1, 0
    %v251 = vsel %vm187, 1, 0
    %v252 = vsel %vm188, 1, 0
    %v253 = vsel %vm189, 1, 0
    %v254 = vsel %vm190, 1, 0
    %v255 = vsel %vm191, 1, 0
    %v256 = vsel %vm192, 1, 0
    %v257 = vsel %vm193, 1, 0
    %v258 = vsel %vm194, 1, 0
    %v259 = vsel %vm195, 1, 0
    %v260 = vsel %vm196, 1, 0
    %v261 = vsel %vm197, 1, 0
    %v262 = vsel %vm198, 1, 0
    %v263 = vsel %vm199, 1, 0
    %v264 = vsel %vm200, 1, 0
    %v265 = vsel %vm201, 1, 0
    %v266 = vsel %vm202, 1, 0
    %v267 = vcvt.s32.f32 %v203
    %v268 = vcvt.s32.f32 %v204
    %v269 = vcvt.s32.f32 %v205
    %v270 = vcvt.s32.f32 %v206
    %v271 = vcvt.s32.f32 %v207
    %v272 = vcvt.s32.f32 %v208
    %v273 = vcvt.s32.f32 %v209
    %v274 = vcvt.s32.f32 %v210
    %v275 = vcvt.s32.f32 %v211
    %v276 = vcvt.s32.f32 %v212
    %v277 = vcvt.s32.f32 %v213
    %v278 = vcvt.s32.f32 %v214
    %v279 = vcvt.s32.f32 %v215
    %v280 = vcvt.s32.f32 %v216
    %v281 = vcvt.s32.f32 %v217
    %v282 = vcvt.s32.f32 %v218
    %v283 = vcvt.s32.f32 %v219
    %v284 = vcvt.s32.f32 %v220
    %v285 = vcvt.s32.f32 %v221
    %v286 = vcvt.s32.f32 %v222
    %v287 = vcvt.s32.f32 %v223
    %v288 = vcvt.s32.f32 %v224
    %v289 = vcvt.s32.f32 %v225
    %v290 = vcvt.s32.f32 %v226
    %v291 = vcvt.s32.f32 %v227
    %v292 = vcvt.s32.f32 %v228
    %v293 = vcvt.s32.f32 %v229
    %v294 = vcvt.s32.f32 %v230
    %v295 = vcvt.s32.f32 %v231
    %v296 = vcvt.s32.f32 %v232
    %v297 = vcvt.s32.f32 %v233
    %v298 = vcvt.s32.f32 %v234
    %v299 = vcvt.s32.f32 %v235
    %v300 = vcvt.s32.f32 %v236
    %v301 = vcvt.s32.f32 %v237
    %v302 = vcvt.s32.f32 %v238
    %v303 = vcvt.s32.f32 %v239
    %v304 = vcvt.s32.f32 %v240
    %v305 = vcvt.s32.f32 %v241
    %v306 = vcvt.s32.f32 %v242
    %v307 = vcvt.s32.f32 %v243
    %v308 = vcvt.s32.f32 %v244
    %v309 = vcvt.s32.f32 %v245
    %v310 = vcvt.s32.f32 %v246
    %v311 = vcvt.s32.f32 %v247
    %v312 = vcvt.s32.f32 %v248
    %v313 = vcvt.s32.f32 %v249
    %v314 = vcvt.s32.f32 %v250
    %v315 = vcvt.s32.f32 %v251
    %v316 = vcvt.s32.f32 %v252
    %v317 = vcvt.s32.f32 %v253
    %v318 = vcvt.s32.f32 %v254
    %v319 = vcvt.s32.f32 %v255
    %v320 = vcvt.s32.f32 %v256
    %v321 = vcvt.s32.f32 %v257
    %v322 = vcvt.s32.f32 %v258
    %v323 = vcvt.s32.f32 %v259
    %v324 = vcvt.s32.f32 %v260
    %v325 = vcvt.s32.f32 %v261
    %v326 = vcvt.s32.f32 %v262
    %v327 = vcvt.s32.f32 %v263
    %v328 = vcvt.s32.f32 %v264
    %v329 = vcvt.s32.f32 %v265
    %v330 = vcvt.s32.f32 %v266
    %v332 = vlaneseq
    %v333 = vshrl.u32 %v332, 7
    %v334 = vsub.s32 0, %v333
    %v335 = vrot.slane %v53, %v334
    %v336 = vlaneseq
    %v337 = vshrl.u32 %v336, 7
    %v338 = vsub.s32 1, %v337
    %v339 = vrot.slane %v53, %v338
    %342 = vmatprep.subr.mxu0 %v268
    %343 = vmatpush1.msra.mxu0 %v267
    %344 = vmatprep.subr.mxu0 %v270
    %345 = vmatpush1.msra.mxu0 %v269
    %346 = vmatprep.subr.mxu0 %v272
    %347 = vmatpush1.msra.mxu0 %v271
    %348 = vmatprep.subr.mxu0 %v274
    %349 = vmatpush1.msra.mxu0 %v273
    %350 = vmatprep.subr.mxu0 %v276
    %351 = vmatpush1.msra.mxu0 %v275
    %352 = vmatprep.subr.mxu0 %v278
    %353 = vmatpush1.msra.mxu0 %v277
    %354 = vmatprep.subr.mxu0 %v280
    %355 = vmatpush1.msra.mxu0 %v279
    %356 = vmatprep.subr.mxu0 %v282
    %357 = vmatpush1.msra.mxu0 %v281
    %358 = vmatprep.subr.mxu0 %v284
    %359 = vmatpush1.msra.mxu0 %v283
    %360 = vmatprep.subr.mxu0 %v286
    %361 = vmatpush1.msra.mxu0 %v285
    %362 = vmatprep.subr.mxu0 %v288
    %363 = vmatpush1.msra.mxu0 %v287
    %364 = vmatprep.subr.mxu0 %v290
    %365 = vmatpush1.msra.mxu0 %v289
    %366 = vmatprep.subr.mxu0 %v292
    %367 = vmatpush1.msra.mxu0 %v291
    %368 = vmatprep.subr.mxu0 %v294
    %369 = vmatpush1.msra.mxu0 %v293
    %370 = vmatprep.subr.mxu0 %v296
    %371 = vmatpush1.msra.mxu0 %v295
    %372 = vmatprep.subr.mxu0 %v298
    %373 = vmatpush1.msra.mxu0 %v297
    %374 = vmatprep.subr.mxu0 %v300
    %375 = vmatpush1.msra.mxu0 %v299
    %376 = vmatprep.subr.mxu0 %v302
    %377 = vmatpush1.msra.mxu0 %v301
    %378 = vmatprep.subr.mxu0 %v304
    %379 = vmatpush1.msra.mxu0 %v303
    %380 = vmatprep.subr.mxu0 %v306
    %381 = vmatpush1.msra.mxu0 %v305
    %382 = vmatprep.subr.mxu0 %v308
    %383 = vmatpush1.msra.mxu0 %v307
    %384 = vmatprep.subr.mxu0 %v310
    %385 = vmatpush1.msra.mxu0 %v309
    %386 = vmatprep.subr.mxu0 %v312
    %387 = vmatpush1.msra.mxu0 %v311
    %388 = vmatprep.subr.mxu0 %v314
    %389 = vmatpush1.msra.mxu0 %v313
    %390 = vmatprep.subr.mxu0 %v316
    %391 = vmatpush1.msra.mxu0 %v315
    %392 = vmatprep.subr.mxu0 %v318
    %393 = vmatpush1.msra.mxu0 %v317
    %394 = vmatprep.subr.mxu0 %v320
    %395 = vmatpush1.msra.mxu0 %v319
    %396 = vmatprep.subr.mxu0 %v322
    %397 = vmatpush1.msra.mxu0 %v321
    %398 = vmatprep.subr.mxu0 %v324
    %399 = vmatpush1.msra.mxu0 %v323
    %400 = vmatprep.subr.mxu0 %v326
    %401 = vmatpush1.msra.mxu0 %v325
    %402 = vmatprep.subr.mxu0 %v328
    %403 = vmatpush1.msra.mxu0 %v327
    %404 = vmatprep.subr.mxu0 %v330
    %405 = vmatpush1.msra.mxu0 %v329
    %406 = vmatprep.mubr.f32.mxu0 %v339
    %407 = vmatmul.mubr.f32.gmra.mrb[0].mxu0 %v335
    %v408 = vpop.f32.mrb[0].mxu0
    %v409 = vadd.f32 0.0, %v408
    %v410 = vpop.f32.mrb[0].mxu0
    %v411 = vadd.f32 0.0, %v410
    %412 = vdwg.mxu0
    %v413 = vlaneseq
    %v414 = vshrl.u32 %v413, 7
    %v415 = vsub.s32 0, %v414
    %v416 = vrot.slane %v85, %v415
    %v417 = vlaneseq
    %v418 = vshrl.u32 %v417, 7
    %v419 = vsub.s32 1, %v418
    %v420 = vrot.slane %v85, %v419
    %vm421 = vcmp.eq.s32.totalorder %v99, %v416
    %vm422 = vcmp.eq.s32.totalorder %v99, %v420
    %vm423 = vcmp.eq.s32.totalorder %v100, %v416
    %vm424 = vcmp.eq.s32.totalorder %v100, %v420
    %vm425 = vcmp.eq.s32.totalorder %v101, %v416
    %vm426 = vcmp.eq.s32.totalorder %v101, %v420
    %vm427 = vcmp.eq.s32.totalorder %v102, %v416
    %vm428 = vcmp.eq.s32.totalorder %v102, %v420
    %vm429 = vcmp.eq.s32.totalorder %v103, %v416
    %vm430 = vcmp.eq.s32.totalorder %v103, %v420
    %vm431 = vcmp.eq.s32.totalorder %v104, %v416
    %vm432 = vcmp.eq.s32.totalorder %v104, %v420
    %vm433 = vcmp.eq.s32.totalorder %v105, %v416
    %vm434 = vcmp.eq.s32.totalorder %v105, %v420
    %vm435 = vcmp.eq.s32.totalorder %v106, %v416
    %vm436 = vcmp.eq.s32.totalorder %v106, %v420
    %vm437 = vcmp.eq.s32.totalorder %v107, %v416
    %vm438 = vcmp.eq.s32.totalorder %v107, %v420
    %vm439 = vcmp.eq.s32.totalorder %v108, %v416
    %vm440 = vcmp.eq.s32.totalorder %v108, %v420
    %vm441 = vcmp.eq.s32.totalorder %v109, %v416
    %vm442 = vcmp.eq.s32.totalorder %v109, %v420
    %vm443 = vcmp.eq.s32.totalorder %v110, %v416
    %vm444 = vcmp.eq.s32.totalorder %v110, %v420
    %vm445 = vcmp.eq.s32.totalorder %v111, %v416
    %vm446 = vcmp.eq.s32.totalorder %v111, %v420
    %vm447 = vcmp.eq.s32.totalorder %v112, %v416
    %vm448 = vcmp.eq.s32.totalorder %v112, %v420
    %vm449 = vcmp.eq.s32.totalorder %v113, %v416
    %vm450 = vcmp.eq.s32.totalorder %v113, %v420
    %vm451 = vcmp.eq.s32.totalorder %v114, %v416
    %vm452 = vcmp.eq.s32.totalorder %v114, %v420
    %vm453 = vcmp.eq.s32.totalorder %v115, %v416
    %vm454 = vcmp.eq.s32.totalorder %v115, %v420
    %vm455 = vcmp.eq.s32.totalorder %v116, %v416
    %vm456 = vcmp.eq.s32.totalorder %v116, %v420
    %vm457 = vcmp.eq.s32.totalorder %v117, %v416
    %vm458 = vcmp.eq.s32.totalorder %v117, %v420
    %vm459 = vcmp.eq.s32.totalorder %v118, %v416
    %vm460 = vcmp.eq.s32.totalorder %v118, %v420
    %vm461 = vcmp.eq.s32.totalorder %v119, %v416
    %vm462 = vcmp.eq.s32.totalorder %v119, %v420
    %vm463 = vcmp.eq.s32.totalorder %v120, %v416
    %vm464 = vcmp.eq.s32.totalorder %v120, %v420
    %vm465 = vcmp.eq.s32.totalorder %v121, %v416
    %vm466 = vcmp.eq.s32.totalorder %v121, %v420
    %vm467 = vcmp.eq.s32.totalorder %v122, %v416
    %vm468 = vcmp.eq.s32.totalorder %v122, %v420
    %vm469 = vcmp.eq.s32.totalorder %v123, %v416
    %vm470 = vcmp.eq.s32.totalorder %v123, %v420
    %vm471 = vcmp.eq.s32.totalorder %v124, %v416
    %vm472 = vcmp.eq.s32.totalorder %v124, %v420
    %vm473 = vcmp.eq.s32.totalorder %v125, %v416
    %vm474 = vcmp.eq.s32.totalorder %v125, %v420
    %vm475 = vcmp.eq.s32.totalorder %v126, %v416
    %vm476 = vcmp.eq.s32.totalorder %v126, %v420
    %vm477 = vcmp.eq.s32.totalorder %v127, %v416
    %vm478 = vcmp.eq.s32.totalorder %v127, %v420
    %vm479 = vcmp.eq.s32.totalorder %v128, %v416
    %vm480 = vcmp.eq.s32.totalorder %v128, %v420
    %vm481 = vcmp.eq.s32.totalorder %v129, %v416
    %vm482 = vcmp.eq.s32.totalorder %v129, %v420
    %vm483 = vcmp.eq.s32.totalorder %v130, %v416
    %vm484 = vcmp.eq.s32.totalorder %v130, %v420
    %v485 = vsel %vm421, 1, 0
    %v486 = vsel %vm422, 1, 0
    %v487 = vsel %vm423, 1, 0
    %v488 = vsel %vm424, 1, 0
    %v489 = vsel %vm425, 1, 0
    %v490 = vsel %vm426, 1, 0
    %v491 = vsel %vm427, 1, 0
    %v492 = vsel %vm428, 1, 0
    %v493 = vsel %vm429, 1, 0
    %v494 = vsel %vm430, 1, 0
    %v495 = vsel %vm431, 1, 0
    %v496 = vsel %vm432, 1, 0
    %v497 = vsel %vm433, 1, 0
    %v498 = vsel %vm434, 1, 0
    %v499 = vsel %vm435, 1, 0
    %v500 = vsel %vm436, 1, 0
    %v501 = vsel %vm437, 1, 0
    %v502 = vsel %vm438, 1, 0
    %v503 = vsel %vm439, 1, 0
    %v504 = vsel %vm440, 1, 0
    %v505 = vsel %vm441, 1, 0
    %v506 = vsel %vm442, 1, 0
    %v507 = vsel %vm443, 1, 0
    %v508 = vsel %vm444, 1, 0
    %v509 = vsel %vm445, 1, 0
    %v510 = vsel %vm446, 1, 0
    %v511 = vsel %vm447, 1, 0
    %v512 = vsel %vm448, 1, 0
    %v513 = vsel %vm449, 1, 0
    %v514 = vsel %vm450, 1, 0
    %v515 = vsel %vm451, 1, 0
    %v516 = vsel %vm452, 1, 0
    %v517 = vsel %vm453, 1, 0
    %v518 = vsel %vm454, 1, 0
    %v519 = vsel %vm455, 1, 0
    %v520 = vsel %vm456, 1, 0
    %v521 = vsel %vm457, 1, 0
    %v522 = vsel %vm458, 1, 0
    %v523 = vsel %vm459, 1, 0
    %v524 = vsel %vm460, 1, 0
    %v525 = vsel %vm461, 1, 0
    %v526 = vsel %vm462, 1, 0
    %v527 = vsel %vm463, 1, 0
    %v528 = vsel %vm464, 1, 0
    %v529 = vsel %vm465, 1, 0
    %v530 = vsel %vm466, 1, 0
    %v531 = vsel %vm467, 1, 0
    %v532 = vsel %vm468, 1, 0
    %v533 = vsel %vm469, 1, 0
    %v534 = vsel %vm470, 1, 0
    %v535 = vsel %vm471, 1, 0
    %v536 = vsel %vm472, 1, 0
    %v537 = vsel %vm473, 1, 0
    %v538 = vsel %vm474, 1, 0
    %v539 = vsel %vm475, 1, 0
    %v540 = vsel %vm476, 1, 0
    %v541 = vsel %vm477, 1, 0
    %v542 = vsel %vm478, 1, 0
    %v543 = vsel %vm479, 1, 0
    %v544 = vsel %vm480, 1, 0
    %v545 = vsel %vm481, 1, 0
    %v546 = vsel %vm482, 1, 0
    %v547 = vsel %vm483, 1, 0
    %v548 = vsel %vm484, 1, 0
    %v549 = vcvt.s32.f32 %v485
    %v550 = vcvt.s32.f32 %v486
    %v551 = vcvt.s32.f32 %v487
    %v552 = vcvt.s32.f32 %v488
    %v553 = vcvt.s32.f32 %v489
    %v554 = vcvt.s32.f32 %v490
    %v555 = vcvt.s32.f32 %v491
    %v556 = vcvt.s32.f32 %v492
    %v557 = vcvt.s32.f32 %v493
    %v558 = vcvt.s32.f32 %v494
    %v559 = vcvt.s32.f32 %v495
    %v560 = vcvt.s32.f32 %v496
    %v561 = vcvt.s32.f32 %v497
    %v562 = vcvt.s32.f32 %v498
    %v563 = vcvt.s32.f32 %v499
    %v564 = vcvt.s32.f32 %v500
    %v565 = vcvt.s32.f32 %v501
    %v566 = vcvt.s32.f32 %v502
    %v567 = vcvt.s32.f32 %v503
    %v568 = vcvt.s32.f32 %v504
    %v569 = vcvt.s32.f32 %v505
    %v570 = vcvt.s32.f32 %v506
    %v571 = vcvt.s32.f32 %v507
    %v572 = vcvt.s32.f32 %v508
    %v573 = vcvt.s32.f32 %v509
    %v574 = vcvt.s32.f32 %v510
    %v575 = vcvt.s32.f32 %v511
    %v576 = vcvt.s32.f32 %v512
    %v577 = vcvt.s32.f32 %v513
    %v578 = vcvt.s32.f32 %v514
    %v579 = vcvt.s32.f32 %v515
    %v580 = vcvt.s32.f32 %v516
    %v581 = vcvt.s32.f32 %v517
    %v582 = vcvt.s32.f32 %v518
    %v583 = vcvt.s32.f32 %v519
    %v584 = vcvt.s32.f32 %v520
    %v585 = vcvt.s32.f32 %v521
    %v586 = vcvt.s32.f32 %v522
    %v587 = vcvt.s32.f32 %v523
    %v588 = vcvt.s32.f32 %v524
    %v589 = vcvt.s32.f32 %v525
    %v590 = vcvt.s32.f32 %v526
    %v591 = vcvt.s32.f32 %v527
    %v592 = vcvt.s32.f32 %v528
    %v593 = vcvt.s32.f32 %v529
    %v594 = vcvt.s32.f32 %v530
    %v595 = vcvt.s32.f32 %v531
    %v596 = vcvt.s32.f32 %v532
    %v597 = vcvt.s32.f32 %v533
    %v598 = vcvt.s32.f32 %v534
    %v599 = vcvt.s32.f32 %v535
    %v600 = vcvt.s32.f32 %v536
    %v601 = vcvt.s32.f32 %v537
    %v602 = vcvt.s32.f32 %v538
    %v603 = vcvt.s32.f32 %v539
    %v604 = vcvt.s32.f32 %v540
    %v605 = vcvt.s32.f32 %v541
    %v606 = vcvt.s32.f32 %v542
    %v607 = vcvt.s32.f32 %v543
    %v608 = vcvt.s32.f32 %v544
    %v609 = vcvt.s32.f32 %v545
    %v610 = vcvt.s32.f32 %v546
    %v611 = vcvt.s32.f32 %v547
    %v612 = vcvt.s32.f32 %v548
    %613 = vmatprep.subr.mxu0 %v550
    %614 = vmatpush1.msra.mxu0 %v549
    %615 = vmatprep.subr.mxu0 %v552
    %616 = vmatpush1.msra.mxu0 %v551
    %617 = vmatprep.subr.mxu0 %v554
    %618 = vmatpush1.msra.mxu0 %v553
    %619 = vmatprep.subr.mxu0 %v556
    %620 = vmatpush1.msra.mxu0 %v555
    %621 = vmatprep.subr.mxu0 %v558
    %622 = vmatpush1.msra.mxu0 %v557
    %623 = vmatprep.subr.mxu0 %v560
    %624 = vmatpush1.msra.mxu0 %v559
    %625 = vmatprep.subr.mxu0 %v562
    %626 = vmatpush1.msra.mxu0 %v561
    %627 = vmatprep.subr.mxu0 %v564
    %628 = vmatpush1.msra.mxu0 %v563
    %629 = vmatprep.subr.mxu0 %v566
    %630 = vmatpush1.msra.mxu0 %v565
    %631 = vmatprep.subr.mxu0 %v568
    %632 = vmatpush1.msra.mxu0 %v567
    %633 = vmatprep.subr.mxu0 %v570
    %634 = vmatpush1.msra.mxu0 %v569
    %635 = vmatprep.subr.mxu0 %v572
    %636 = vmatpush1.msra.mxu0 %v571
    %637 = vmatprep.subr.mxu0 %v574
    %638 = vmatpush1.msra.mxu0 %v573
    %639 = vmatprep.subr.mxu0 %v576
    %640 = vmatpush1.msra.mxu0 %v575
    %641 = vmatprep.subr.mxu0 %v578
    %642 = vmatpush1.msra.mxu0 %v577
    %643 = vmatprep.subr.mxu0 %v580
    %644 = vmatpush1.msra.mxu0 %v579
    %645 = vmatprep.subr.mxu0 %v582
    %646 = vmatpush1.msra.mxu0 %v581
    %647 = vmatprep.subr.mxu0 %v584
    %648 = vmatpush1.msra.mxu0 %v583
    %649 = vmatprep.subr.mxu0 %v586
    %650 = vmatpush1.msra.mxu0 %v585
    %651 = vmatprep.subr.mxu0 %v588
    %652 = vmatpush1.msra.mxu0 %v587
    %653 = vmatprep.subr.mxu0 %v590
    %654 = vmatpush1.msra.mxu0 %v589
    %655 = vmatprep.subr.mxu0 %v592
    %656 = vmatpush1.msra.mxu0 %v591
    %657 = vmatprep.subr.mxu0 %v594
    %658 = vmatpush1.msra.mxu0 %v593
    %659 = vmatprep.subr.mxu0 %v596
    %660 = vmatpush1.msra.mxu0 %v595
    %661 = vmatprep.subr.mxu0 %v598
    %662 = vmatpush1.msra.mxu0 %v597
    %663 = vmatprep.subr.mxu0 %v600
    %664 = vmatpush1.msra.mxu0 %v599
    %665 = vmatprep.subr.mxu0 %v602
    %666 = vmatpush1.msra.mxu0 %v601
    %667 = vmatprep.subr.mxu0 %v604
    %668 = vmatpush1.msra.mxu0 %v603
    %669 = vmatprep.subr.mxu0 %v606
    %670 = vmatpush1.msra.mxu0 %v605
    %671 = vmatprep.subr.mxu0 %v608
    %672 = vmatpush1.msra.mxu0 %v607
    %673 = vmatprep.subr.mxu0 %v610
    %674 = vmatpush1.msra.mxu0 %v609
    %675 = vmatprep.subr.mxu0 %v612
    %676 = vmatpush1.msra.mxu0 %v611
    %677 = vmatprep.mubr.f32.mxu0 %v339
    %678 = vmatmul.mubr.f32.gmra.mrb[0].mxu0 %v335
    %v679 = vpop.f32.mrb[0].mxu0
    %v680 = vadd.f32 0.0, %v679
    %v681 = vpop.f32.mrb[0].mxu0
    %v682 = vadd.f32 0.0, %v681
    %683 = vdwg.mxu0
    %v684 = vlaneseq
    %v685 = vshrl.u32 %v684, 7
    %v686 = vsub.s32 0, %v685
    %v687 = vrot.slane %v97, %v686
    %v688 = vlaneseq
    %v689 = vshrl.u32 %v688, 7
    %v690 = vsub.s32 1, %v689
    %v691 = vrot.slane %v97, %v690
    %vm692 = vcmp.eq.s32.totalorder %v99, %v687
    %vm693 = vcmp.eq.s32.totalorder %v99, %v691
    %vm694 = vcmp.eq.s32.totalorder %v100, %v687
    %vm695 = vcmp.eq.s32.totalorder %v100, %v691
    %vm696 = vcmp.eq.s32.totalorder %v101, %v687
    %vm697 = vcmp.eq.s32.totalorder %v101, %v691
    %vm698 = vcmp.eq.s32.totalorder %v102, %v687
    %vm699 = vcmp.eq.s32.totalorder %v102, %v691
    %vm700 = vcmp.eq.s32.totalorder %v103, %v687
    %vm701 = vcmp.eq.s32.totalorder %v103, %v691
    %vm702 = vcmp.eq.s32.totalorder %v104, %v687
    %vm703 = vcmp.eq.s32.totalorder %v104, %v691
    %vm704 = vcmp.eq.s32.totalorder %v105, %v687
    %vm705 = vcmp.eq.s32.totalorder %v105, %v691
    %vm706 = vcmp.eq.s32.totalorder %v106, %v687
    %vm707 = vcmp.eq.s32.totalorder %v106, %v691
    %vm708 = vcmp.eq.s32.totalorder %v107, %v687
    %vm709 = vcmp.eq.s32.totalorder %v107, %v691
    %vm710 = vcmp.eq.s32.totalorder %v108, %v687
    %vm711 = vcmp.eq.s32.totalorder %v108, %v691
    %vm712 = vcmp.eq.s32.totalorder %v109, %v687
    %vm713 = vcmp.eq.s32.totalorder %v109, %v691
    %vm714 = vcmp.eq.s32.totalorder %v110, %v687
    %vm715 = vcmp.eq.s32.totalorder %v110, %v691
    %vm716 = vcmp.eq.s32.totalorder %v111, %v687
    %vm717 = vcmp.eq.s32.totalorder %v111, %v691
    %vm718 = vcmp.eq.s32.totalorder %v112, %v687
    %vm719 = vcmp.eq.s32.totalorder %v112, %v691
    %vm720 = vcmp.eq.s32.totalorder %v113, %v687
    %vm721 = vcmp.eq.s32.totalorder %v113, %v691
    %vm722 = vcmp.eq.s32.totalorder %v114, %v687
    %vm723 = vcmp.eq.s32.totalorder %v114, %v691
    %vm724 = vcmp.eq.s32.totalorder %v115, %v687
    %vm725 = vcmp.eq.s32.totalorder %v115, %v691
    %vm726 = vcmp.eq.s32.totalorder %v116, %v687
    %vm727 = vcmp.eq.s32.totalorder %v116, %v691
    %vm728 = vcmp.eq.s32.totalorder %v117, %v687
    %vm729 = vcmp.eq.s32.totalorder %v117, %v691
    %vm730 = vcmp.eq.s32.totalorder %v118, %v687
    %vm731 = vcmp.eq.s32.totalorder %v118, %v691
    %vm732 = vcmp.eq.s32.totalorder %v119, %v687
    %vm733 = vcmp.eq.s32.totalorder %v119, %v691
    %vm734 = vcmp.eq.s32.totalorder %v120, %v687
    %vm735 = vcmp.eq.s32.totalorder %v120, %v691
    %vm736 = vcmp.eq.s32.totalorder %v121, %v687
    %vm737 = vcmp.eq.s32.totalorder %v121, %v691
    %vm738 = vcmp.eq.s32.totalorder %v122, %v687
    %vm739 = vcmp.eq.s32.totalorder %v122, %v691
    %vm740 = vcmp.eq.s32.totalorder %v123, %v687
    %vm741 = vcmp.eq.s32.totalorder %v123, %v691
    %vm742 = vcmp.eq.s32.totalorder %v124, %v687
    %vm743 = vcmp.eq.s32.totalorder %v124, %v691
    %vm744 = vcmp.eq.s32.totalorder %v125, %v687
    %vm745 = vcmp.eq.s32.totalorder %v125, %v691
    %vm746 = vcmp.eq.s32.totalorder %v126, %v687
    %vm747 = vcmp.eq.s32.totalorder %v126, %v691
    %vm748 = vcmp.eq.s32.totalorder %v127, %v687
    %vm749 = vcmp.eq.s32.totalorder %v127, %v691
    %vm750 = vcmp.eq.s32.totalorder %v128, %v687
    %vm751 = vcmp.eq.s32.totalorder %v128, %v691
    %vm752 = vcmp.eq.s32.totalorder %v129, %v687
    %vm753 = vcmp.eq.s32.totalorder %v129, %v691
    %vm754 = vcmp.eq.s32.totalorder %v130, %v687
    %vm755 = vcmp.eq.s32.totalorder %v130, %v691
    %v756 = vsel %vm692, 1, 0
    %v757 = vsel %vm693, 1, 0
    %v758 = vsel %vm694, 1, 0
    %v759 = vsel %vm695, 1, 0
    %v760 = vsel %vm696, 1, 0
    %v761 = vsel %vm697, 1, 0
    %v762 = vsel %vm698, 1, 0
    %v763 = vsel %vm699, 1, 0
    %v764 = vsel %vm700, 1, 0
    %v765 = vsel %vm701, 1, 0
    %v766 = vsel %vm702, 1, 0
    %v767 = vsel %vm703, 1, 0
    %v768 = vsel %vm704, 1, 0
    %v769 = vsel %vm705, 1, 0
    %v770 = vsel %vm706, 1, 0
    %v771 = vsel %vm707, 1, 0
    %v772 = vsel %vm708, 1, 0
    %v773 = vsel %vm709, 1, 0
    %v774 = vsel %vm710, 1, 0
    %v775 = vsel %vm711, 1, 0
    %v776 = vsel %vm712, 1, 0
    %v777 = vsel %vm713, 1, 0
    %v778 = vsel %vm714, 1, 0
    %v779 = vsel %vm715, 1, 0
    %v780 = vsel %vm716, 1, 0
    %v781 = vsel %vm717, 1, 0
    %v782 = vsel %vm718, 1, 0
    %v783 = vsel %vm719, 1, 0
    %v784 = vsel %vm720, 1, 0
    %v785 = vsel %vm721, 1, 0
    %v786 = vsel %vm722, 1, 0
    %v787 = vsel %vm723, 1, 0
    %v788 = vsel %vm724, 1, 0
    %v789 = vsel %vm725, 1, 0
    %v790 = vsel %vm726, 1, 0
    %v791 = vsel %vm727, 1, 0
    %v792 = vsel %vm728, 1, 0
    %v793 = vsel %vm729, 1, 0
    %v794 = vsel %vm730, 1, 0
    %v795 = vsel %vm731, 1, 0
    %v796 = vsel %vm732, 1, 0
    %v797 = vsel %vm733, 1, 0
    %v798 = vsel %vm734, 1, 0
    %v799 = vsel %vm735, 1, 0
    %v800 = vsel %vm736, 1, 0
    %v801 = vsel %vm737, 1, 0
    %v802 = vsel %vm738, 1, 0
    %v803 = vsel %vm739, 1, 0
    %v804 = vsel %vm740, 1, 0
    %v805 = vsel %vm741, 1, 0
    %v806 = vsel %vm742, 1, 0
    %v807 = vsel %vm743, 1, 0
    %v808 = vsel %vm744, 1, 0
    %v809 = vsel %vm745, 1, 0
    %v810 = vsel %vm746, 1, 0
    %v811 = vsel %vm747, 1, 0
    %v812 = vsel %vm748, 1, 0
    %v813 = vsel %vm749, 1, 0
    %v814 = vsel %vm750, 1, 0
    %v815 = vsel %vm751, 1, 0
    %v816 = vsel %vm752, 1, 0
    %v817 = vsel %vm753, 1, 0
    %v818 = vsel %vm754, 1, 0
    %v819 = vsel %vm755, 1, 0
    %v820 = vcvt.s32.f32 %v756
    %v821 = vcvt.s32.f32 %v757
    %v822 = vcvt.s32.f32 %v758
    %v823 = vcvt.s32.f32 %v759
    %v824 = vcvt.s32.f32 %v760
    %v825 = vcvt.s32.f32 %v761
    %v826 = vcvt.s32.f32 %v762
    %v827 = vcvt.s32.f32 %v763
    %v828 = vcvt.s32.f32 %v764
    %v829 = vcvt.s32.f32 %v765
    %v830 = vcvt.s32.f32 %v766
    %v831 = vcvt.s32.f32 %v767
    %v832 = vcvt.s32.f32 %v768
    %v833 = vcvt.s32.f32 %v769
    %v834 = vcvt.s32.f32 %v770
    %v835 = vcvt.s32.f32 %v771
    %v836 = vcvt.s32.f32 %v772
    %v837 = vcvt.s32.f32 %v773
    %v838 = vcvt.s32.f32 %v774
    %v839 = vcvt.s32.f32 %v775
    %v840 = vcvt.s32.f32 %v776
    %v841 = vcvt.s32.f32 %v777
    %v842 = vcvt.s32.f32 %v778
    %v843 = vcvt.s32.f32 %v779
    %v844 = vcvt.s32.f32 %v780
    %v845 = vcvt.s32.f32 %v781
    %v846 = vcvt.s32.f32 %v782
    %v847 = vcvt.s32.f32 %v783
    %v848 = vcvt.s32.f32 %v784
    %v849 = vcvt.s32.f32 %v785
    %v850 = vcvt.s32.f32 %v786
    %v851 = vcvt.s32.f32 %v787
    %v852 = vcvt.s32.f32 %v788
    %v853 = vcvt.s32.f32 %v789
    %v854 = vcvt.s32.f32 %v790
    %v855 = vcvt.s32.f32 %v791
    %v856 = vcvt.s32.f32 %v792
    %v857 = vcvt.s32.f32 %v793
    %v858 = vcvt.s32.f32 %v794
    %v859 = vcvt.s32.f32 %v795
    %v860 = vcvt.s32.f32 %v796
    %v861 = vcvt.s32.f32 %v797
    %v862 = vcvt.s32.f32 %v798
    %v863 = vcvt.s32.f32 %v799
    %v864 = vcvt.s32.f32 %v800
    %v865 = vcvt.s32.f32 %v801
    %v866 = vcvt.s32.f32 %v802
    %v867 = vcvt.s32.f32 %v803
    %v868 = vcvt.s32.f32 %v804
    %v869 = vcvt.s32.f32 %v805
    %v870 = vcvt.s32.f32 %v806
    %v871 = vcvt.s32.f32 %v807
    %v872 = vcvt.s32.f32 %v808
    %v873 = vcvt.s32.f32 %v809
    %v874 = vcvt.s32.f32 %v810
    %v875 = vcvt.s32.f32 %v811
    %v876 = vcvt.s32.f32 %v812
    %v877 = vcvt.s32.f32 %v813
    %v878 = vcvt.s32.f32 %v814
    %v879 = vcvt.s32.f32 %v815
    %v880 = vcvt.s32.f32 %v816
    %v881 = vcvt.s32.f32 %v817
    %v882 = vcvt.s32.f32 %v818
    %v883 = vcvt.s32.f32 %v819
    %884 = vmatprep.subr.mxu0 %v821
    %885 = vmatpush1.msra.mxu0 %v820
    %886 = vmatprep.subr.mxu0 %v823
    %887 = vmatpush1.msra.mxu0 %v822
    %888 = vmatprep.subr.mxu0 %v825
    %889 = vmatpush1.msra.mxu0 %v824
    %890 = vmatprep.subr.mxu0 %v827
    %891 = vmatpush1.msra.mxu0 %v826
    %892 = vmatprep.subr.mxu0 %v829
    %893 = vmatpush1.msra.mxu0 %v828
    %894 = vmatprep.subr.mxu0 %v831
    %895 = vmatpush1.msra.mxu0 %v830
    %896 = vmatprep.subr.mxu0 %v833
    %897 = vmatpush1.msra.mxu0 %v832
    %898 = vmatprep.subr.mxu0 %v835
    %899 = vmatpush1.msra.mxu0 %v834
    %900 = vmatprep.subr.mxu0 %v837
    %901 = vmatpush1.msra.mxu0 %v836
    %902 = vmatprep.subr.mxu0 %v839
    %903 = vmatpush1.msra.mxu0 %v838
    %904 = vmatprep.subr.mxu0 %v841
    %905 = vmatpush1.msra.mxu0 %v840
    %906 = vmatprep.subr.mxu0 %v843
    %907 = vmatpush1.msra.mxu0 %v842
    %908 = vmatprep.subr.mxu0 %v845
    %909 = vmatpush1.msra.mxu0 %v844
    %910 = vmatprep.subr.mxu0 %v847
    %911 = vmatpush1.msra.mxu0 %v846
    %912 = vmatprep.subr.mxu0 %v849
    %913 = vmatpush1.msra.mxu0 %v848
    %914 = vmatprep.subr.mxu0 %v851
    %915 = vmatpush1.msra.mxu0 %v850
    %916 = vmatprep.subr.mxu0 %v853
    %917 = vmatpush1.msra.mxu0 %v852
    %918 = vmatprep.subr.mxu0 %v855
    %919 = vmatpush1.msra.mxu0 %v854
    %920 = vmatprep.subr.mxu0 %v857
    %921 = vmatpush1.msra.mxu0 %v856
    %922 = vmatprep.subr.mxu0 %v859
    %923 = vmatpush1.msra.mxu0 %v858
    %924 = vmatprep.subr.mxu0 %v861
    %925 = vmatpush1.msra.mxu0 %v860
    %926 = vmatprep.subr.mxu0 %v863
    %927 = vmatpush1.msra.mxu0 %v862
    %928 = vmatprep.subr.mxu0 %v865
    %929 = vmatpush1.msra.mxu0 %v864
    %930 = vmatprep.subr.mxu0 %v867
    %931 = vmatpush1.msra.mxu0 %v866
    %932 = vmatprep.subr.mxu0 %v869
    %933 = vmatpush1.msra.mxu0 %v868
    %934 = vmatprep.subr.mxu0 %v871
    %935 = vmatpush1.msra.mxu0 %v870
    %936 = vmatprep.subr.mxu0 %v873
    %937 = vmatpush1.msra.mxu0 %v872
    %938 = vmatprep.subr.mxu0 %v875
    %939 = vmatpush1.msra.mxu0 %v874
    %940 = vmatprep.subr.mxu0 %v877
    %941 = vmatpush1.msra.mxu0 %v876
    %942 = vmatprep.subr.mxu0 %v879
    %943 = vmatpush1.msra.mxu0 %v878
    %944 = vmatprep.subr.mxu0 %v881
    %945 = vmatpush1.msra.mxu0 %v880
    %946 = vmatprep.subr.mxu0 %v883
    %947 = vmatpush1.msra.mxu0 %v882
    %948 = vmatprep.mubr.f32.mxu0 %v339
    %949 = vmatmul.mubr.f32.gmra.mrb[0].mxu0 %v335
    %v950 = vpop.f32.mrb[0].mxu0
    %v951 = vadd.f32 0.0, %v950
    %v952 = vpop.f32.mrb[0].mxu0
    %v953 = vadd.f32 0.0, %v952
    %954 = vdwg.mxu0
    %v955 = vmax.f32 %v680, %v951
    %v956 = vmax.f32 %v682, %v953
    %v957 = vmax.f32 %v409, %v955
    %v958 = vmax.f32 %v411, %v956
    %v959 = vsub.f32 %v409, %v957
    %v960 = vsub.f32 %v411, %v958
    %v961 = vmul.f32 %v959, 1.442695
    %v962 = vpow.pop %v961
    %v963 = vmul.f32 %v960, 1.442695
    %v964 = vpow.pop %v963
    %v965 = vsub.f32 %v680, %v957
    %v966 = vsub.f32 %v682, %v958
    %v967 = vmul.f32 %v965, 1.442695
    %v968 = vpow.pop %v967
    %v969 = vmul.f32 %v966, 1.442695
    %v970 = vpow.pop %v969
    %v971 = vsub.f32 %v951, %v957
    %v972 = vsub.f32 %v953, %v958
    %v973 = vmul.f32 %v971, 1.442695
    %v974 = vpow.pop %v973
    %v975 = vmul.f32 %v972, 1.442695
    %v976 = vpow.pop %v975
    %v977 = vadd.f32 %v962, %v968
    %v978 = vadd.f32 %v964, %v970
    %v979 = vadd.f32 %v977, %v974
    %v980 = vadd.f32 %v978, %v976
    %v981 = vrcp.pop %v979
    %v982 = vmul.f32 1.0, %v981
    %v983 = vrcp.pop %v980
    %v984 = vmul.f32 1.0, %v983
    %v985 = vmul.f32 %v962, %v982
    %v986 = vmul.f32 %v964, %v984
    %v987 = vmul.f32 %v968, %v982
    %v988 = vmul.f32 %v970, %v984
    %v991 = vcombine.low %v985, %v986
    %v993 = vunpack.c.l.s4 1966171168
    %v994 = vunpack.c.0.s8 %v993
    %v995 = vlaneseq
    %v996 = vshrl.u32 %v995, 7
    %v997 = vsub.s32 %v994, %v996
    %v998 = vrot.slane %v991, %v997
    %v1000 = vunpack.c.l.s4 1966171168
    %v1001 = vunpack.c.0.s8 %v1000
    %v1002 = vlaneseq
    %v1003 = vshrl.u32 %v1002, 7
    %v1004 = vsub.s32 %v1001, %v1003
    %v1005 = vrot.slane %v998, %v1004
    %vm1007 = vcmp.lt.f32.partialorder %v51, %v1005
    %vm1008 = vmxor %vm1007, 1
    %v1009 = vadd.f32 %v985, %v987
    %v1010 = vadd.f32 %v986, %v988
    %v1013 = vcombine.low %v1009, %v1010
    %v1015 = vunpack.c.l.s4 1966171168
    %v1016 = vunpack.c.0.s8 %v1015
    %v1017 = vlaneseq
    %v1018 = vshrl.u32 %v1017, 7
    %v1019 = vsub.s32 %v1016, %v1018
    %v1020 = vrot.slane %v1013, %v1019
    %v1022 = vunpack.c.l.s4 1966171168
    %v1023 = vunpack.c.0.s8 %v1022
    %v1024 = vlaneseq
    %v1025 = vshrl.u32 %v1024, 7
    %v1026 = vsub.s32 %v1023, %v1025
    %v1027 = vrot.slane %v1020, %v1026
    %vm1029 = vcmp.lt.f32.partialorder %v51, %v1027
    %vm1030 = vmand %vm1008, %vm1029
    %v1031 = vsel %vm1007, 1, 0
    %v1032 = vcvt.s32.f32 %v1031
    %v1033 = vsel %vm1030, 1, 0
    %v1034 = vcvt.s32.f32 %v1033
    %v1035 = vsub.f32 1.0, %v1032
    %v1036 = vsub.f32 %v1035, %v1034
    %v1037 = vmul.f32 %v1032, %v56
    %v1038 = vmul.f32 %v1034, %v60
    %v1039 = vadd.f32 %v1037, %v1038
    %v1040 = vmul.f32 %v1036, %v49
    %v1041 = vadd.f32 %v1039, %v1040
    %v1042 = vmul.f32 %v1032, %v59
    %v1043 = vmul.f32 %v1034, %v61
    %v1044 = vadd.f32 %v1042, %v1043
    %v1045 = vmul.f32 %v1036, %v50
    %v1046 = vadd.f32 %v1044, %v1045
    %v1047 = vmul.f32 %v1041, 0.1
    %v1048 = vadd.f32 %v46, %v1047
    %v1049 = vmul.f32 %v1046, 0.1
    %v1050 = vadd.f32 %v47, %v1049
    %vm1051 = vcmp.ge.f32.partialorder %v1048, 16.0
    %vm1052 = vcmp.le.f32.partialorder %v1048, 0.0
    %vm1053 = vcmp.ge.f32.partialorder %v1050, 16.0
    %vm1054 = vcmp.le.f32.partialorder %v1050, 0.0
    %v1055 = vmax.f32 %v1048, 0.0
    %v1056 = vmin.f32 %v1055, 15.0
    %v1057 = vmax.f32 %v1050, 0.0
    %v1058 = vmin.f32 %v1057, 15.0
    %vm1059 = vmor %vm1051, %vm1052
    %v1060 = vsel %vm1059, %v1056, %v1048
    %v1061 = vlaneseq
    %vm1062 = vcmp.ge.s32.totalorder %v1061, 0
    %vm1063 = vcmp.lt.s32.totalorder %v1061, 256
    %vm1064 = vmand %vm1062, %vm1063
    %1065 = vst.msk [vmem:[#allocation5] sm:$0x3] %vm1064, %v1060
    %vm1066 = vmor %vm1053, %vm1054
    %v1067 = vsel %vm1066, %v1058, %v1050
    %1068 = vst.msk [vmem:[#allocation6] sm:$0x3] %vm1064, %v1067
    %v1069 = vsel %vm1051, 1, 0
    %v1070 = vcvt.s32.f32 %v1069
    %v1071 = vsel %vm1052, 1, 0
    %v1072 = vcvt.s32.f32 %v1071
    %v1073 = vadd.f32 %v1070, %v1072
    %v1074 = vsel %vm1053, 1, 0
    %v1075 = vcvt.s32.f32 %v1074
    %v1076 = vadd.f32 %v1073, %v1075
    %v1077 = vsel %vm1054, 1, 0
    %v1078 = vcvt.s32.f32 %v1077
    %v1079 = vadd.f32 %v1076, %v1078
    %v1080 = vmul.f32 %v1079, %v52
    %v1081 = vsub.f32 %v1079, 1.0
    %v1082 = vand.u32 2147483647, %v1081
    %v1083 = vmul.f32 %v1082, %v48
    %v1084 = vadd.f32 %v1080, %v1083
    %1085 = vst.msk [vmem:[#allocation8] sm:$0x3] %vm1064, %v1084
    // Predicated region
    $region38: #{tpu_custom_call.1} parent=1 // pred_check
      _
    $region39: #{tpu_custom_call.1} parent=1 // pred_check_branch
      %1087 = sbr.rel (0) target = $region41
    $region40: #{tpu_custom_call.1} parent=1 // pred_region
      %s1089 = ssub.s32 32, 32
      %1090 = vsyncadd [#allocation4], %s1089
      %s1092 = sshll.u32 [#allocation5], 4
      %s1093 = int_to_ptr.vmem [resolvable:$true] %s1092
      %1095 = dma.vmem_to_hbm [thread:$0]  %s1093, 32, %s8, [#allocation4]
    $region41: #{tpu_custom_call.1} parent=1 // pred_fallthru
      _
    // Predicated region
    $region42: #{tpu_custom_call.1} parent=1 // pred_check
      _
    $region43: #{tpu_custom_call.1} parent=1 // pred_check_branch
      %1097 = sbr.rel (0) target = $region45
    $region44: #{tpu_custom_call.1} parent=1 // pred_region
      %s1099 = ssub.s32 32, 32
      %1100 = vsyncadd [#allocation7], %s1099
      %s1102 = sshll.u32 [#allocation6], 4
      %s1103 = int_to_ptr.vmem [resolvable:$true] %s1102
      %1105 = dma.vmem_to_hbm [thread:$0]  %s1103, 32, %s9, [#allocation7]
    $region45: #{tpu_custom_call.1} parent=1 // pred_fallthru
      _
    // Predicated region
    $region46: #{tpu_custom_call.1} parent=1 // pred_check
      _
    $region47: #{tpu_custom_call.1} parent=1 // pred_check_branch
      %1107 = sbr.rel (0) target = $region49
    $region48: #{tpu_custom_call.1} parent=1 // pred_region
      %s1109 = ssub.s32 32, 32
      %1110 = vsyncadd [#allocation7], %s1109
      %s1112 = sshll.u32 [#allocation8], 4
      %s1113 = int_to_ptr.vmem [resolvable:$true] %s1112
      %1115 = dma.vmem_to_hbm [thread:$0]  %s1113, 32, %s10, [#allocation7]
    $region49: #{tpu_custom_call.1} parent=1 // pred_fallthru
      _
    // Predicated region
    $region50: #{tpu_custom_call.1} parent=1 // pred_check
      _
    $region51: #{tpu_custom_call.1} parent=1 // pred_check_branch
      %1117 = sbr.rel (0) target = $region53
    $region52: #{tpu_custom_call.1} parent=1 // pred_region
      %1118 = dma.done [#allocation4], 32
    $region53: #{tpu_custom_call.1} parent=1 // pred_fallthru
      _
    // Predicated region
    $region54: #{tpu_custom_call.1} parent=1 // pred_check
      _
    $region55: #{tpu_custom_call.1} parent=1 // pred_check_branch
      %1120 = sbr.rel (0) target = $region57
    $region56: #{tpu_custom_call.1} parent=1 // pred_region
      %1121 = dma.done [#allocation7], 32
    $region57: #{tpu_custom_call.1} parent=1 // pred_fallthru
      _
    // Predicated region
    $region58: #{tpu_custom_call.1} parent=1 // pred_check
      _
    $region59: #{tpu_custom_call.1} parent=1 // pred_check_branch
      %1123 = sbr.rel (0) target = $region61
    $region60: #{tpu_custom_call.1} parent=1 // pred_region
      %1124 = dma.done [#allocation7], 32
    $region61: #{tpu_custom_call.1} parent=1 // pred_fallthru
      _
    %1125 = vsyncpa [#allocation3], 1
    %1126 = vsyncpa [#allocation4], 1
    %1127 = vsyncpa [#allocation7], 1

</llo_original>
